<compile_context>
chip_gen: v7x
topology: tpu7x:2x2x1
jax: 0.10.0
libtpu: 0.0.40
codegen_flags: <defaults>
</compile_context>

<pallas_src>
import math

import jax
import jax.numpy as jnp
from jax.experimental import pallas as pl
from jax.experimental.pallas import tpu as pltpu

HIDDEN = 128
K_PAD = 8          # layer-1 contraction dim padded 3 -> 8 (sublane multiple)
MAX_TILE_M = 4096  # VMEM-safe upper bound for the batch tile


def mlp_kernel(x_ref, w1_ref, b1_ref, w2_ref, b2_ref, w3_ref, b3_ref, o_ref):
    """Fused 3-layer MLP forward for one batch tile (everything stays in VMEM)."""
    # ---- Layer 1: (tm, 8) @ (8, 128) f32 MXU pass (K zero-padded 3 -> 8).
    h = jnp.dot(x_ref[...], w1_ref[...],
                preferred_element_type=jnp.float32) + b1_ref[...]
    h = jnp.where(h >= 0.0, h, 0.2 * h)             # LeakyReLU(0.2)

    # ---- Layer 2: (tm, 128) @ (128, 128), bf16 MXU inputs, f32 accumulate.
    h = jnp.dot(h.astype(jnp.bfloat16), w2_ref[...],
                preferred_element_type=jnp.float32) + b2_ref[...]
    h = jnp.where(h >= 0.0, h, 0.2 * h)             # LeakyReLU(0.2)

    # ---- Layer 3: weights zero-padded to 128 output columns so the MXU pass
    # is full-width, but only the 2 real columns are written back.
    out = jnp.dot(h.astype(jnp.bfloat16), w3_ref[...],
                  preferred_element_type=jnp.float32) + b3_ref[...]
    o_ref[...] = out[:, :o_ref.shape[1]].astype(o_ref.dtype)   # (tm, 2)


def _round_up(v, m):
    return -(-v // m) * m


def _choose_tile_m(n, requested):
    """128-aligned batch tile: big enough to amortize grid-step overhead,
    small enough for VMEM, >= 2 tiles for large N (v7x has 2 TensorCores)."""
    t = min(max(requested, 128), MAX_TILE_M)
    t = max(128, (t // 128) * 128)
    t = min(t, _round_up(n, 128))                # don't over-pad tiny batches
    if n > 2 * 128:                              # keep both v7x TCs busy
        t = min(t, max(128, _round_up(-(-n // 2), 128)))
    return t


def mlp_forward(x, params, *, tile_m=2048):
    """x: [N, 3] float32.  params: dict of w1,b1,w2,b2,w3,b3.  Returns [N, 2]."""
    N, d_in = x.shape
    assert d_in == 3

    tile_m = _choose_tile_m(N, tile_m)
    n_tiles = pl.cdiv(N, tile_m)
    N_pad = n_tiles * tile_m

    # One fused pad: batch -> tile multiple, features 3 -> 8 (zeros contribute
    # nothing to the layer-1 matmul).
    xp = jnp.pad(x, ((0, N_pad - N), (0, K_PAD - d_in)))

    # Weight prep (outside the kernel, once per call):
    w1p = jnp.pad(params["w1"], ((0, K_PAD - d_in), (0, 0)))           # (8, 128)  f32
    b1 = params["b1"]                                                  # (1, 128)  f32
    w2 = params["w2"].astype(jnp.bfloat16)                             # (128,128) bf16
    b2 = params["b2"]                                                  # (1, 128)  f32
    w3 = params["w3"]
    b3 = params["b3"]
    out_cols = w3.shape[1]                                             # 2
    w3p = jnp.pad(w3, ((0, 0), (0, HIDDEN - out_cols))).astype(jnp.bfloat16)  # (128,128) bf16
    b3p = jnp.pad(b3, ((0, 0), (0, HIDDEN - out_cols)))                # (1, 128)  f32

    # Constant (grid-invariant) operands: single-buffered, VMEM-resident.
    const = lambda a: pl.BlockSpec(a.shape, lambda i: (0, 0),
                                   pipeline_mode=pl.Buffered(1))

    out = pl.pallas_call(
        mlp_kernel,
        out_shape=jax.ShapeDtypeStruct((N_pad, out_cols), jnp.float32),
        grid_spec=pltpu.PrefetchScalarGridSpec(
            num_scalar_prefetch=0,
            grid=(n_tiles,),
            in_specs=[
                pl.BlockSpec((tile_m, K_PAD), lambda i: (i, 0)),   # x tile
                const(w1p), const(b1),
                const(w2), const(b2),
                const(w3p), const(b3p),
            ],
            # Last dim (2) equals the full array dim -> (8,128) rule satisfied,
            # and HBM writeback is only the 8 real bytes per row.
            out_specs=pl.BlockSpec((tile_m, out_cols), lambda i: (i, 0)),
        ),
        compiler_params=pltpu.CompilerParams(
            dimension_semantics=("parallel",),        # shards batch across TCs
            vmem_limit_bytes=32 * 1024 * 1024,        # headroom for 4096-row tiles
        ),
    )(xp, w1p, b1, w2, b2, w3p, b3p)

    return out[:N]


def init_params(key):
    """Deterministic init matching PyTorch nn.Linear default: U(-1/sqrt(fan_in), 1/sqrt(fan_in))."""
    def linear(key, fan_in, fan_out):
        kw, kb = jax.random.split(key)
        bound = 1.0 / math.sqrt(fan_in)
        # stored as [in, out] (transposed vs. PyTorch's [out, in]) for x @ W
        w = jax.random.uniform(kw, (fan_in, fan_out), jnp.float32, -bound, bound)
        b = jax.random.uniform(kb, (1, fan_out), jnp.float32, -bound, bound)
        return w, b

    k1, k2, k3 = jax.random.split(key, 3)
    w1, b1 = linear(k1, 3, HIDDEN)
    w2, b2 = linear(k2, HIDDEN, HIDDEN)
    w3, b3 = linear(k3, HIDDEN, 2)
    return {"w1": w1, "b1": b1, "w2": w2, "b2": b2, "w3": w3, "b3": b3}


def mlp_reference(x, p):
    """Pure-JAX f32 reference of the same forward pass."""
    h = x @ p["w1"] + p["b1"]
    h = jnp.where(h >= 0, h, 0.2 * h)
    h = h @ p["w2"] + p["b2"]
    h = jnp.where(h >= 0, h, 0.2 * h)
    return h @ p["w3"] + p["b3"]


if __name__ == "__main__":
    key = jax.random.PRNGKey(0)
    kp, kx = jax.random.split(key)

    params = init_params(kp)
    x = jax.random.normal(kx, (16, 3), jnp.float32)   # small batch of 2D-coord-like inputs

    out = mlp_forward(x, params)                      # batch auto-padded to one 128-row tile
    out = jax.block_until_ready(out)

    ref = mlp_reference(x, params)
    assert out.shape == (16, 2)
    # bf16 MXU inputs (f32 accumulation) -> ~1e-3 abs error vs the f32 reference.
    assert jnp.allclose(out, ref, atol=2e-2, rtol=2e-2), \
        f"max abs err {jnp.max(jnp.abs(out - ref))}"

    print("KERNEL_OK")
</pallas_src>

<mosaic_0001>
module attributes {stable_mosaic.version = 11 : i64} {
  func.func @mlp_kernel(%arg0: i32, %arg1: memref<128x8xf32, #tpu.memory_space<vmem>>, %arg2: memref<8x128xf32, #tpu.memory_space<vmem>>, %arg3: memref<1x128xf32, #tpu.memory_space<vmem>>, %arg4: memref<128x128xbf16, #tpu.memory_space<vmem>>, %arg5: memref<1x128xf32, #tpu.memory_space<vmem>>, %arg6: memref<128x128xbf16, #tpu.memory_space<vmem>>, %arg7: memref<1x128xf32, #tpu.memory_space<vmem>>, %arg8: memref<128x2xf32, #tpu.memory_space<vmem>>) attributes {dimension_semantics = [#tpu.dimension_semantics<parallel>], iteration_bounds = array<i64: 1>, scalar_prefetch = 0 : i64, scratch_operands = 0 : i64, tpu.core_type = #tpu.core_type<tc>, window_params = [{transform_indices = @transform_0, window_bounds = array<i64: 128, 8>}, {pipeline_mode = #tpu.pipeline_mode<synchronous>, transform_indices = @transform_1, window_bounds = array<i64: 8, 128>}, {pipeline_mode = #tpu.pipeline_mode<synchronous>, transform_indices = @transform_2, window_bounds = array<i64: 1, 128>}, {pipeline_mode = #tpu.pipeline_mode<synchronous>, transform_indices = @transform_3, window_bounds = array<i64: 128, 128>}, {pipeline_mode = #tpu.pipeline_mode<synchronous>, transform_indices = @transform_4, window_bounds = array<i64: 1, 128>}, {pipeline_mode = #tpu.pipeline_mode<synchronous>, transform_indices = @transform_5, window_bounds = array<i64: 128, 128>}, {pipeline_mode = #tpu.pipeline_mode<synchronous>, transform_indices = @transform_6, window_bounds = array<i64: 1, 128>}, {transform_indices = @transform_7, window_bounds = array<i64: 128, 2>}]} {
    %c0 = arith.constant 0 : index
    %c0_0 = arith.constant 0 : index
    %0 = vector.load %arg1[%c0, %c0_0] : memref<128x8xf32, #tpu.memory_space<vmem>>, vector<128x8xf32>
    %c0_1 = arith.constant 0 : index
    %c0_2 = arith.constant 0 : index
    %1 = vector.load %arg2[%c0_1, %c0_2] : memref<8x128xf32, #tpu.memory_space<vmem>>, vector<8x128xf32>
    %cst = arith.constant dense<0.000000e+00> : vector<128x128xf32>
    %2 = tpu.matmul %0, %1, %cst {dimension_numbers = #tpu.dot_dimension_numbers<[1], [0], [0], [1], [0, 0, 1, 1], [], []>} : vector<128x8xf32>, vector<8x128xf32>, vector<128x128xf32> -> vector<128x128xf32>
    %c0_3 = arith.constant 0 : index
    %c0_4 = arith.constant 0 : index
    %3 = vector.load %arg3[%c0_3, %c0_4] : memref<1x128xf32, #tpu.memory_space<vmem>>, vector<1x128xf32>
    %4 = vector.broadcast %3 : vector<1x128xf32> to vector<128x128xf32>
    %5 = arith.addf %2, %4 : vector<128x128xf32>
    %cst_5 = arith.constant 0.000000e+00 : f32
    %6 = vector.broadcast %cst_5 : f32 to vector<128x128xf32>
    %7 = arith.cmpf oge, %5, %6 : vector<128x128xf32>
    %cst_6 = arith.constant 2.000000e-01 : f32
    %8 = vector.broadcast %cst_6 : f32 to vector<128x128xf32>
    %9 = arith.mulf %8, %5 : vector<128x128xf32>
    %10 = arith.select %7, %5, %9 : vector<128x128xi1>, vector<128x128xf32>
    %11 = arith.truncf %10 : vector<128x128xf32> to vector<128x128xbf16>
    %c0_7 = arith.constant 0 : index
    %c0_8 = arith.constant 0 : index
    %12 = vector.load %arg4[%c0_7, %c0_8] : memref<128x128xbf16, #tpu.memory_space<vmem>>, vector<128x128xbf16>
    %cst_9 = arith.constant dense<0.000000e+00> : vector<128x128xf32>
    %13 = tpu.matmul %11, %12, %cst_9 {dimension_numbers = #tpu.dot_dimension_numbers<[1], [0], [0], [1], [0, 0, 1, 1], [], []>} : vector<128x128xbf16>, vector<128x128xbf16>, vector<128x128xf32> -> vector<128x128xf32>
    %c0_10 = arith.constant 0 : index
    %c0_11 = arith.constant 0 : index
    %14 = vector.load %arg5[%c0_10, %c0_11] : memref<1x128xf32, #tpu.memory_space<vmem>>, vector<1x128xf32>
    %15 = vector.broadcast %14 : vector<1x128xf32> to vector<128x128xf32>
    %16 = arith.addf %13, %15 : vector<128x128xf32>
    %cst_12 = arith.constant 0.000000e+00 : f32
    %17 = vector.broadcast %cst_12 : f32 to vector<128x128xf32>
    %18 = arith.cmpf oge, %16, %17 : vector<128x128xf32>
    %cst_13 = arith.constant 2.000000e-01 : f32
    %19 = vector.broadcast %cst_13 : f32 to vector<128x128xf32>
    %20 = arith.mulf %19, %16 : vector<128x128xf32>
    %21 = arith.select %18, %16, %20 : vector<128x128xi1>, vector<128x128xf32>
    %22 = arith.truncf %21 : vector<128x128xf32> to vector<128x128xbf16>
    %c0_14 = arith.constant 0 : index
    %c0_15 = arith.constant 0 : index
    %23 = vector.load %arg6[%c0_14, %c0_15] : memref<128x128xbf16, #tpu.memory_space<vmem>>, vector<128x128xbf16>
    %cst_16 = arith.constant dense<0.000000e+00> : vector<128x128xf32>
    %24 = tpu.matmul %22, %23, %cst_16 {dimension_numbers = #tpu.dot_dimension_numbers<[1], [0], [0], [1], [0, 0, 1, 1], [], []>} : vector<128x128xbf16>, vector<128x128xbf16>, vector<128x128xf32> -> vector<128x128xf32>
    %c0_17 = arith.constant 0 : index
    %c0_18 = arith.constant 0 : index
    %25 = vector.load %arg7[%c0_17, %c0_18] : memref<1x128xf32, #tpu.memory_space<vmem>>, vector<1x128xf32>
    %26 = vector.broadcast %25 : vector<1x128xf32> to vector<128x128xf32>
    %27 = arith.addf %24, %26 : vector<128x128xf32>
    %28 = vector.extract_strided_slice %27 {offsets = [0, 0], sizes = [128, 2], strides = [1, 1]} : vector<128x128xf32> to vector<128x2xf32>
    %c0_19 = arith.constant 0 : index
    %c0_20 = arith.constant 0 : index
    %29 = vector.load %arg8[%c0_19, %c0_20] : memref<128x2xf32, #tpu.memory_space<vmem>>, vector<128x2xf32>
    tpu.vector_store %arg8[%c0_19, %c0_20], %28 {strides = array<i32>} : memref<128x2xf32, #tpu.memory_space<vmem>>, vector<128x2xf32>,
    return
  }
  func.func @transform_0(%arg0: i32) -> (i32, i32) {
    %c0_i32 = arith.constant 0 : i32
    %c0_i32_0 = arith.constant 0 : i32
    return %arg0, %c0_i32 : i32, i32
  }
  func.func @transform_1(%arg0: i32) -> (i32, i32) {
    %c0_i32 = arith.constant 0 : i32
    %c0_i32_0 = arith.constant 0 : i32
    %c0_i32_1 = arith.constant 0 : i32
    return %c0_i32, %c0_i32_0 : i32, i32
  }
  func.func @transform_2(%arg0: i32) -> (i32, i32) {
    %c0_i32 = arith.constant 0 : i32
    %c0_i32_0 = arith.constant 0 : i32
    %c0_i32_1 = arith.constant 0 : i32
    return %c0_i32, %c0_i32_0 : i32, i32
  }
  func.func @transform_3(%arg0: i32) -> (i32, i32) {
    %c0_i32 = arith.constant 0 : i32
    %c0_i32_0 = arith.constant 0 : i32
    %c0_i32_1 = arith.constant 0 : i32
    return %c0_i32, %c0_i32_0 : i32, i32
  }
  func.func @transform_4(%arg0: i32) -> (i32, i32) {
    %c0_i32 = arith.constant 0 : i32
    %c0_i32_0 = arith.constant 0 : i32
    %c0_i32_1 = arith.constant 0 : i32
    return %c0_i32, %c0_i32_0 : i32, i32
  }
  func.func @transform_5(%arg0: i32) -> (i32, i32) {
    %c0_i32 = arith.constant 0 : i32
    %c0_i32_0 = arith.constant 0 : i32
    %c0_i32_1 = arith.constant 0 : i32
    return %c0_i32, %c0_i32_0 : i32, i32
  }
  func.func @transform_6(%arg0: i32) -> (i32, i32) {
    %c0_i32 = arith.constant 0 : i32
    %c0_i32_0 = arith.constant 0 : i32
    %c0_i32_1 = arith.constant 0 : i32
    return %c0_i32, %c0_i32_0 : i32, i32
  }
  func.func @transform_7(%arg0: i32) -> (i32, i32) {
    %c0_i32 = arith.constant 0 : i32
    %c0_i32_0 = arith.constant 0 : i32
    return %arg0, %c0_i32 : i32, i32
  }
}

</mosaic_0001>

<llo_original>
// kernel: tpu_custom_call.1
$region0: #{tpu_custom_call.1}
  #allocation0 [shape = 'u32[]', space=smem, size = 0x4, offset = 0x4, fixed_abs, tag = 'smem constant byte address 0x4 - core index']
  #allocation1 [shape = 'u32[144,128]{1,0:T(1,128)}', space=vmem, size = 0x12000, scoped, tag = 'internal scratch']
  %s0 = inlined_call_operand.vmem [shape: f32[128,8], index: 0, kind: input, shape index: {}]
  %s1 = inlined_call_operand.vmem [shape: f32[8,128], index: 1, kind: input, shape index: {}]
  %s2 = inlined_call_operand.vmem [shape: f32[1,128], index: 2, kind: input, shape index: {}]
  %s3 = inlined_call_operand.vmem [shape: bf16[128,128], index: 3, kind: input, shape index: {}]
  %s4 = inlined_call_operand.vmem [shape: f32[1,128], index: 4, kind: input, shape index: {}]
  %s5 = inlined_call_operand.vmem [shape: bf16[128,128], index: 5, kind: input, shape index: {}]
  %s6 = inlined_call_operand.vmem [shape: f32[1,128], index: 6, kind: input, shape index: {}]
  %s7 = inlined_call_operand.vmem [shape: f32[128,2], index: 7, kind: output, shape index: {}]
  %s8 = sld [smem:[#allocation0]]
  $region38: #{tpu_custom_call.1} parent=0
    _
  %s10 = ssub.s32 1, %s8
  %s11 = scalar_select 0, %s10, %s8
  // Predicated region
  $region2: #{tpu_custom_call.1} parent=0 // pred_check
    _
  $region3: #{tpu_custom_call.1} parent=0 // pred_check_branch
    %13 = sbr.rel (0) target = $region5
  $region4: #{tpu_custom_call.1} parent=0 // pred_region
    _
  $region5: #{tpu_custom_call.1} parent=0 // pred_fallthru
    _
  // Predicated region
  $region6: #{tpu_custom_call.1} parent=0 // pred_check
    _
  $region7: #{tpu_custom_call.1} parent=0 // pred_check_branch
    %15 = sbr.rel (0) target = $region9
  $region8: #{tpu_custom_call.1} parent=0 // pred_region
    _
  $region9: #{tpu_custom_call.1} parent=0 // pred_fallthru
    _
  // Predicated region
  $region10: #{tpu_custom_call.1} parent=0 // pred_check
    _
  $region11: #{tpu_custom_call.1} parent=0 // pred_check_branch
    %17 = sbr.rel (0) target = $region13
  $region12: #{tpu_custom_call.1} parent=0 // pred_region
    _
  $region13: #{tpu_custom_call.1} parent=0 // pred_fallthru
    _
  // Predicated region
  $region14: #{tpu_custom_call.1} parent=0 // pred_check
    _
  $region15: #{tpu_custom_call.1} parent=0 // pred_check_branch
    %19 = sbr.rel (0) target = $region17
  $region16: #{tpu_custom_call.1} parent=0 // pred_region
    _
  $region17: #{tpu_custom_call.1} parent=0 // pred_fallthru
    _
  // Predicated region
  $region18: #{tpu_custom_call.1} parent=0 // pred_check
    _
  $region19: #{tpu_custom_call.1} parent=0 // pred_check_branch
    %21 = sbr.rel (0) target = $region21
  $region20: #{tpu_custom_call.1} parent=0 // pred_region
    _
  $region21: #{tpu_custom_call.1} parent=0 // pred_fallthru
    _
  // Predicated region
  $region22: #{tpu_custom_call.1} parent=0 // pred_check
    _
  $region23: #{tpu_custom_call.1} parent=0 // pred_check_branch
    %23 = sbr.rel (0) target = $region25
  $region24: #{tpu_custom_call.1} parent=0 // pred_region
    _
  $region25: #{tpu_custom_call.1} parent=0 // pred_fallthru
    _
  // Predicated region
  $region26: #{tpu_custom_call.1} parent=0 // pred_check
    _
  $region27: #{tpu_custom_call.1} parent=0 // pred_check_branch
    %25 = sbr.rel (0) target = $region29
  $region28: #{tpu_custom_call.1} parent=0 // pred_region
    _
  $region29: #{tpu_custom_call.1} parent=0 // pred_fallthru
    _
  %v27 = vld [vmem:[%s0] sm:$0xff]
  %v28 = vld [vmem:[%s0 + $0x8] sm:$0xff]
  %v29 = vld [vmem:[%s0 + $0x10] sm:$0xff]
  %v30 = vld [vmem:[%s0 + $0x18] sm:$0xff]
  %v31 = vld [vmem:[%s0 + $0x20] sm:$0xff]
  %v32 = vld [vmem:[%s0 + $0x28] sm:$0xff]
  %v33 = vld [vmem:[%s0 + $0x30] sm:$0xff]
  %v34 = vld [vmem:[%s0 + $0x38] sm:$0xff]
  %v35 = vld [vmem:[%s0 + $0x40] sm:$0xff]
  %v36 = vld [vmem:[%s0 + $0x48] sm:$0xff]
  %v37 = vld [vmem:[%s0 + $0x50] sm:$0xff]
  %v38 = vld [vmem:[%s0 + $0x58] sm:$0xff]
  %v39 = vld [vmem:[%s0 + $0x60] sm:$0xff]
  %v40 = vld [vmem:[%s0 + $0x68] sm:$0xff]
  %v41 = vld [vmem:[%s0 + $0x70] sm:$0xff]
  %v42 = vld [vmem:[%s0 + $0x78] sm:$0xff]
  %v43 = vld [vmem:[%s1] sm:$0xff]
  %v44 = vld [vmem:[%s2] sm:$0x1]
  %v46 = vlaneseq
  %v47 = vshrl.u32 %v46, 7
  %v48 = vsub.s32 0, %v47
  %v49 = vrot.slane %v44, %v48
  %vm51 = vcmask 64512
  %v53 = vsel %vm51, %v27, 0
  %v56 = vsel %vm51, %v28, 0
  %v59 = vsel %vm51, %v29, 0
  %v62 = vsel %vm51, %v30, 0
  %v65 = vsel %vm51, %v31, 0
  %v68 = vsel %vm51, %v32, 0
  %v71 = vsel %vm51, %v33, 0
  %v74 = vsel %vm51, %v34, 0
  %v77 = vsel %vm51, %v35, 0
  %v80 = vsel %vm51, %v36, 0
  %v83 = vsel %vm51, %v37, 0
  %v86 = vsel %vm51, %v38, 0
  %v89 = vsel %vm51, %v39, 0
  %v92 = vsel %vm51, %v40, 0
  %v95 = vsel %vm51, %v41, 0
  %v98 = vsel %vm51, %v42, 0
  %100 = vmatprep.subr.mxu0 0.0
  %101 = vmatpush1.msra.mxu0 %v43
  %102 = vmatprep.subr.mxu0 0.0
  %103 = vmatpush1.msra.mxu0 0.0
  %104 = vmatprep.subr.mxu0 0.0
  %105 = vmatpush1.msra.mxu0 0.0
  %106 = vmatprep.subr.mxu0 0.0
  %107 = vmatpush1.msra.mxu0 0.0
  %108 = vmatprep.subr.mxu0 0.0
  %109 = vmatpush1.msra.mxu0 0.0
  %110 = vmatprep.subr.mxu0 0.0
  %111 = vmatpush1.msra.mxu0 0.0
  %112 = vmatprep.subr.mxu0 0.0
  %113 = vmatpush1.msra.mxu0 0.0
  %114 = vmatprep.subr.mxu0 0.0
  %115 = vmatpush1.msra.mxu0 0.0
  %116 = vmatprep.subr.mxu0 0.0
  %117 = vmatpush1.msra.mxu0 0.0
  %118 = vmatprep.subr.mxu0 0.0
  %119 = vmatpush1.msra.mxu0 0.0
  %120 = vmatprep.subr.mxu0 0.0
  %121 = vmatpush1.msra.mxu0 0.0
  %122 = vmatprep.subr.mxu0 0.0
  %123 = vmatpush1.msra.mxu0 0.0
  %124 = vmatprep.subr.mxu0 0.0
  %125 = vmatpush1.msra.mxu0 0.0
  %126 = vmatprep.subr.mxu0 0.0
  %127 = vmatpush1.msra.mxu0 0.0
  %128 = vmatprep.subr.mxu0 0.0
  %129 = vmatpush1.msra.mxu0 0.0
  %130 = vmatprep.subr.mxu0 0.0
  %131 = vmatpush1.msra.mxu0 0.0
  %132 = vmatprep.subr.mxu0 0.0
  %133 = vmatpush1.msra.mxu0 0.0
  %134 = vmatprep.subr.mxu0 0.0
  %135 = vmatpush1.msra.mxu0 0.0
  %136 = vmatprep.subr.mxu0 0.0
  %137 = vmatpush1.msra.mxu0 0.0
  %138 = vmatprep.subr.mxu0 0.0
  %139 = vmatpush1.msra.mxu0 0.0
  %140 = vmatprep.subr.mxu0 0.0
  %141 = vmatpush1.msra.mxu0 0.0
  %142 = vmatprep.subr.mxu0 0.0
  %143 = vmatpush1.msra.mxu0 0.0
  %144 = vmatprep.subr.mxu0 0.0
  %145 = vmatpush1.msra.mxu0 0.0
  %146 = vmatprep.subr.mxu0 0.0
  %147 = vmatpush1.msra.mxu0 0.0
  %148 = vmatprep.subr.mxu0 0.0
  %149 = vmatpush1.msra.mxu0 0.0
  %150 = vmatprep.subr.mxu0 0.0
  %151 = vmatpush1.msra.mxu0 0.0
  %152 = vmatprep.subr.mxu0 0.0
  %153 = vmatpush1.msra.mxu0 0.0
  %154 = vmatprep.subr.mxu0 0.0
  %155 = vmatpush1.msra.mxu0 0.0
  %156 = vmatprep.subr.mxu0 0.0
  %157 = vmatpush1.msra.mxu0 0.0
  %158 = vmatprep.subr.mxu0 0.0
  %159 = vmatpush1.msra.mxu0 0.0
  %160 = vmatprep.subr.mxu0 0.0
  %161 = vmatpush1.msra.mxu0 0.0
  %162 = vmatprep.subr.mxu0 0.0
  %163 = vmatpush1.msra.mxu0 0.0
  %164 = vmatprep.mubr.f32.mxu0 0.0
  %165 = vmatmul.mubr.f32.gmra.mrb[0].mxu0 %v53
  %v166 = vpop.f32.mrb[0].mxu0
  %v167 = vadd.f32 %v49, %v166
  %v168 = vpop.f32.mrb[0].mxu0
  %169 = vmatprep.mubr.f32.mxu0 0.0
  %170 = vmatmul.mubr.f32.gmra.mrb[0].mxu0 %v56
  %v171 = vpop.f32.mrb[0].mxu0
  %v172 = vadd.f32 %v49, %v171
  %v173 = vpop.f32.mrb[0].mxu0
  %174 = vmatprep.mubr.f32.mxu0 0.0
  %175 = vmatmul.mubr.f32.gmra.mrb[0].mxu0 %v59
  %v176 = vpop.f32.mrb[0].mxu0
  %v177 = vadd.f32 %v49, %v176
  %v178 = vpop.f32.mrb[0].mxu0
  %179 = vmatprep.mubr.f32.mxu0 0.0
  %180 = vmatmul.mubr.f32.gmra.mrb[0].mxu0 %v62
  %v181 = vpop.f32.mrb[0].mxu0
  %v182 = vadd.f32 %v49, %v181
  %v183 = vpop.f32.mrb[0].mxu0
  %184 = vmatprep.mubr.f32.mxu0 0.0
  %185 = vmatmul.mubr.f32.gmra.mrb[0].mxu0 %v65
  %v186 = vpop.f32.mrb[0].mxu0
  %v187 = vadd.f32 %v49, %v186
  %v188 = vpop.f32.mrb[0].mxu0
  %189 = vmatprep.mubr.f32.mxu0 0.0
  %190 = vmatmul.mubr.f32.gmra.mrb[0].mxu0 %v68
  %v191 = vpop.f32.mrb[0].mxu0
  %v192 = vadd.f32 %v49, %v191
  %v193 = vpop.f32.mrb[0].mxu0
  %194 = vmatprep.mubr.f32.mxu0 0.0
  %195 = vmatmul.mubr.f32.gmra.mrb[0].mxu0 %v71
  %v196 = vpop.f32.mrb[0].mxu0
  %v197 = vadd.f32 %v49, %v196
  %v198 = vpop.f32.mrb[0].mxu0
  %199 = vmatprep.mubr.f32.mxu0 0.0
  %200 = vmatmul.mubr.f32.gmra.mrb[0].mxu0 %v74
  %v201 = vpop.f32.mrb[0].mxu0
  %v202 = vadd.f32 %v49, %v201
  %v203 = vpop.f32.mrb[0].mxu0
  %204 = vmatprep.mubr.f32.mxu0 0.0
  %205 = vmatmul.mubr.f32.gmra.mrb[0].mxu0 %v77
  %v206 = vpop.f32.mrb[0].mxu0
  %v207 = vadd.f32 %v49, %v206
  %v208 = vpop.f32.mrb[0].mxu0
  %209 = vmatprep.mubr.f32.mxu0 0.0
  %210 = vmatmul.mubr.f32.gmra.mrb[0].mxu0 %v80
  %v211 = vpop.f32.mrb[0].mxu0
  %v212 = vadd.f32 %v49, %v211
  %v213 = vpop.f32.mrb[0].mxu0
  %214 = vmatprep.mubr.f32.mxu0 0.0
  %215 = vmatmul.mubr.f32.gmra.mrb[0].mxu0 %v83
  %v216 = vpop.f32.mrb[0].mxu0
  %v217 = vadd.f32 %v49, %v216
  %v218 = vpop.f32.mrb[0].mxu0
  %219 = vmatprep.mubr.f32.mxu0 0.0
  %220 = vmatmul.mubr.f32.gmra.mrb[0].mxu0 %v86
  %v221 = vpop.f32.mrb[0].mxu0
  %v222 = vadd.f32 %v49, %v221
  %v223 = vpop.f32.mrb[0].mxu0
  %224 = vmatprep.mubr.f32.mxu0 0.0
  %225 = vmatmul.mubr.f32.gmra.mrb[0].mxu0 %v89
  %v226 = vpop.f32.mrb[0].mxu0
  %v227 = vadd.f32 %v49, %v226
  %v228 = vpop.f32.mrb[0].mxu0
  %229 = vmatprep.mubr.f32.mxu0 0.0
  %230 = vmatmul.mubr.f32.gmra.mrb[0].mxu0 %v92
  %v231 = vpop.f32.mrb[0].mxu0
  %v232 = vadd.f32 %v49, %v231
  %v233 = vpop.f32.mrb[0].mxu0
  %234 = vmatprep.mubr.f32.mxu0 0.0
  %235 = vmatmul.mubr.f32.gmra.mrb[0].mxu0 %v95
  %v236 = vpop.f32.mrb[0].mxu0
  %v237 = vadd.f32 %v49, %v236
  %v238 = vpop.f32.mrb[0].mxu0
  %239 = vmatprep.mubr.f32.mxu0 0.0
  %240 = vmatmul.mubr.f32.gmra.mrb[0].mxu0 %v98
  %v241 = vpop.f32.mrb[0].mxu0
  %v242 = vadd.f32 %v49, %v241
  %v243 = vpop.f32.mrb[0].mxu0
  %244 = vdwg.mxu0
  %vm245 = vcmp.ge.f32.partialorder %v167, 0.0
  %vm246 = vcmp.ge.f32.partialorder %v172, 0.0
  %vm247 = vcmp.ge.f32.partialorder %v177, 0.0
  %vm248 = vcmp.ge.f32.partialorder %v182, 0.0
  %vm249 = vcmp.ge.f32.partialorder %v187, 0.0
  %vm250 = vcmp.ge.f32.partialorder %v192, 0.0
  %vm251 = vcmp.ge.f32.partialorder %v197, 0.0
  %vm252 = vcmp.ge.f32.partialorder %v202, 0.0
  %vm253 = vcmp.ge.f32.partialorder %v207, 0.0
  %vm254 = vcmp.ge.f32.partialorder %v212, 0.0
  %vm255 = vcmp.ge.f32.partialorder %v217, 0.0
  %vm256 = vcmp.ge.f32.partialorder %v222, 0.0
  %vm257 = vcmp.ge.f32.partialorder %v227, 0.0
  %vm258 = vcmp.ge.f32.partialorder %v232, 0.0
  %vm259 = vcmp.ge.f32.partialorder %v237, 0.0
  %vm260 = vcmp.ge.f32.partialorder %v242, 0.0
  %v261 = vmul.f32 %v167, 0.2
  %v262 = vmul.f32 %v172, 0.2
  %v263 = vmul.f32 %v177, 0.2
  %v264 = vmul.f32 %v182, 0.2
  %v265 = vmul.f32 %v187, 0.2
  %v266 = vmul.f32 %v192, 0.2
  %v267 = vmul.f32 %v197, 0.2
  %v268 = vmul.f32 %v202, 0.2
  %v269 = vmul.f32 %v207, 0.2
  %v270 = vmul.f32 %v212, 0.2
  %v271 = vmul.f32 %v217, 0.2
  %v272 = vmul.f32 %v222, 0.2
  %v273 = vmul.f32 %v227, 0.2
  %v274 = vmul.f32 %v232, 0.2
  %v275 = vmul.f32 %v237, 0.2
  %v276 = vmul.f32 %v242, 0.2
  %v277 = vsel %vm245, %v167, %v261
  %v278 = vsel %vm246, %v172, %v262
  %v279 = vsel %vm247, %v177, %v263
  %v280 = vsel %vm248, %v182, %v264
  %v281 = vsel %vm249, %v187, %v265
  %v282 = vsel %vm250, %v192, %v266
  %v283 = vsel %vm251, %v197, %v267
  %v284 = vsel %vm252, %v202, %v268
  %v285 = vsel %vm253, %v207, %v269
  %v286 = vsel %vm254, %v212, %v270
  %v287 = vsel %vm255, %v217, %v271
  %v288 = vsel %vm256, %v222, %v272
  %v289 = vsel %vm257, %v227, %v273
  %v290 = vsel %vm258, %v232, %v274
  %v291 = vsel %vm259, %v237, %v275
  %v292 = vsel %vm260, %v242, %v276
  %v293 = vpack.c.bf16 %v278, %v277
  %v294 = vpack.c.bf16 %v280, %v279
  %v295 = vpack.c.bf16 %v282, %v281
  %v296 = vpack.c.bf16 %v284, %v283
  %v297 = vpack.c.bf16 %v286, %v285
  %v298 = vpack.c.bf16 %v288, %v287
  %v299 = vpack.c.bf16 %v290, %v289
  %v300 = vpack.c.bf16 %v292, %v291
  %v301 = vld [vmem:[%s3] sm:$0xf]
  %v302 = vld [vmem:[%s3 + $0x4] sm:$0xf]
  %v303 = vld [vmem:[%s3 + $0x8] sm:$0xf]
  %v304 = vld [vmem:[%s3 + $0xc] sm:$0xf]
  %v305 = vld [vmem:[%s3 + $0x10] sm:$0xf]
  %v306 = vld [vmem:[%s3 + $0x14] sm:$0xf]
  %v307 = vld [vmem:[%s3 + $0x18] sm:$0xf]
  %v308 = vld [vmem:[%s3 + $0x1c] sm:$0xf]
  %v309 = vld [vmem:[%s3 + $0x20] sm:$0xf]
  %v310 = vld [vmem:[%s3 + $0x24] sm:$0xf]
  %v311 = vld [vmem:[%s3 + $0x28] sm:$0xf]
  %v312 = vld [vmem:[%s3 + $0x2c] sm:$0xf]
  %v313 = vld [vmem:[%s3 + $0x30] sm:$0xf]
  %v314 = vld [vmem:[%s3 + $0x34] sm:$0xf]
  %v315 = vld [vmem:[%s3 + $0x38] sm:$0xf]
  %v316 = vld [vmem:[%s3 + $0x3c] sm:$0xf]
  %v317 = vld [vmem:[%s4] sm:$0x1]
  %v319 = vlaneseq
  %v320 = vshrl.u32 %v319, 7
  %v321 = vsub.s32 0, %v320
  %v322 = vrot.slane %v317, %v321
  %v340 = vunpack.c.l.b16 %v301
  %v341 = vunpack.c.l.b16 %v302
  %v342 = vunpack.c.l.b16 %v303
  %v343 = vunpack.c.l.b16 %v304
  %v344 = vunpack.c.l.b16 %v305
  %v345 = vunpack.c.l.b16 %v306
  %v346 = vunpack.c.l.b16 %v307
  %v347 = vunpack.c.l.b16 %v308
  %v348 = vunpack.c.l.b16 %v309
  %v349 = vunpack.c.l.b16 %v310
  %v350 = vunpack.c.l.b16 %v311
  %v351 = vunpack.c.l.b16 %v312
  %v352 = vunpack.c.l.b16 %v313
  %v353 = vunpack.c.l.b16 %v314
  %v354 = vunpack.c.l.b16 %v315
  %v355 = vunpack.c.l.b16 %v316
  %v356 = vpack.c.b16 %v341, %v340
  %v357 = vpack.c.b16 %v343, %v342
  %v358 = vpack.c.b16 %v345, %v344
  %v359 = vpack.c.b16 %v347, %v346
  %v360 = vpack.c.b16 %v349, %v348
  %v361 = vpack.c.b16 %v351, %v350
  %v362 = vpack.c.b16 %v353, %v352
  %v363 = vpack.c.b16 %v355, %v354
  %372 = vmatprep.subr.bf16.mxu0 0
  %373 = vmatpush1.bf16.msra.mxu0 %v356
  %374 = vmatprep.subr.bf16.mxu0 0
  %375 = vmatpush1.bf16.msra.mxu0 %v357
  %376 = vmatprep.subr.bf16.mxu0 0
  %377 = vmatpush1.bf16.msra.mxu0 %v358
  %378 = vmatprep.subr.bf16.mxu0 0
  %379 = vmatpush1.bf16.msra.mxu0 %v359
  %380 = vmatprep.subr.bf16.mxu0 0
  %381 = vmatpush1.bf16.msra.mxu0 %v360
  %382 = vmatprep.subr.bf16.mxu0 0
  %383 = vmatpush1.bf16.msra.mxu0 %v361
  %384 = vmatprep.subr.bf16.mxu0 0
  %385 = vmatpush1.bf16.msra.mxu0 %v362
  %386 = vmatprep.subr.bf16.mxu0 0
  %387 = vmatpush1.bf16.msra.mxu0 %v363
  %388 = vmatprep.subr.bf16.mxu0 0
  %389 = vmatpush1.bf16.msra.mxu0 0
  %390 = vmatprep.subr.bf16.mxu0 0
  %391 = vmatpush1.bf16.msra.mxu0 0
  %392 = vmatprep.subr.bf16.mxu0 0
  %393 = vmatpush1.bf16.msra.mxu0 0
  %394 = vmatprep.subr.bf16.mxu0 0
  %395 = vmatpush1.bf16.msra.mxu0 0
  %396 = vmatprep.subr.bf16.mxu0 0
  %397 = vmatpush1.bf16.msra.mxu0 0
  %398 = vmatprep.subr.bf16.mxu0 0
  %399 = vmatpush1.bf16.msra.mxu0 0
  %400 = vmatprep.subr.bf16.mxu0 0
  %401 = vmatpush1.bf16.msra.mxu0 0
  %402 = vmatprep.subr.bf16.mxu0 0
  %403 = vmatpush1.bf16.msra.mxu0 0
  %404 = vmatprep.mubr.bf16.mxu0 0
  %405 = vmatmul.mubr.bf16.gmra.mrb[0].mxu0 %v293
  %v406 = vpop.f32.mrb[0].mxu0
  %v407 = vadd.f32 %v322, %v406
  %v408 = vpop.f32.mrb[0].mxu0
  %v409 = vpop.f32.mrb[0].mxu0
  %v410 = vadd.f32 %v322, %v409
  %v411 = vpop.f32.mrb[0].mxu0
  %412 = vmatprep.mubr.bf16.mxu0 0
  %413 = vmatmul.mubr.bf16.gmra.mrb[0].mxu0 %v294
  %v414 = vpop.f32.mrb[0].mxu0
  %v415 = vadd.f32 %v322, %v414
  %v416 = vpop.f32.mrb[0].mxu0
  %v417 = vpop.f32.mrb[0].mxu0
  %v418 = vadd.f32 %v322, %v417
  %v419 = vpop.f32.mrb[0].mxu0
  %420 = vmatprep.mubr.bf16.mxu0 0
  %421 = vmatmul.mubr.bf16.gmra.mrb[0].mxu0 %v295
  %v422 = vpop.f32.mrb[0].mxu0
  %v423 = vadd.f32 %v322, %v422
  %v424 = vpop.f32.mrb[0].mxu0
  %v425 = vpop.f32.mrb[0].mxu0
  %v426 = vadd.f32 %v322, %v425
  %v427 = vpop.f32.mrb[0].mxu0
  %428 = vmatprep.mubr.bf16.mxu0 0
  %429 = vmatmul.mubr.bf16.gmra.mrb[0].mxu0 %v296
  %v430 = vpop.f32.mrb[0].mxu0
  %v431 = vadd.f32 %v322, %v430
  %v432 = vpop.f32.mrb[0].mxu0
  %v433 = vpop.f32.mrb[0].mxu0
  %v434 = vadd.f32 %v322, %v433
  %v435 = vpop.f32.mrb[0].mxu0
  %436 = vmatprep.mubr.bf16.mxu0 0
  %437 = vmatmul.mubr.bf16.gmra.mrb[0].mxu0 %v297
  %v438 = vpop.f32.mrb[0].mxu0
  %v439 = vadd.f32 %v322, %v438
  %v440 = vpop.f32.mrb[0].mxu0
  %v441 = vpop.f32.mrb[0].mxu0
  %v442 = vadd.f32 %v322, %v441
  %v443 = vpop.f32.mrb[0].mxu0
  %444 = vmatprep.mubr.bf16.mxu0 0
  %445 = vmatmul.mubr.bf16.gmra.mrb[0].mxu0 %v298
  %v446 = vpop.f32.mrb[0].mxu0
  %v447 = vadd.f32 %v322, %v446
  %v448 = vpop.f32.mrb[0].mxu0
  %v449 = vpop.f32.mrb[0].mxu0
  %v450 = vadd.f32 %v322, %v449
  %v451 = vpop.f32.mrb[0].mxu0
  %452 = vmatprep.mubr.bf16.mxu0 0
  %453 = vmatmul.mubr.bf16.gmra.mrb[0].mxu0 %v299
  %v454 = vpop.f32.mrb[0].mxu0
  %v455 = vadd.f32 %v322, %v454
  %v456 = vpop.f32.mrb[0].mxu0
  %v457 = vpop.f32.mrb[0].mxu0
  %v458 = vadd.f32 %v322, %v457
  %v459 = vpop.f32.mrb[0].mxu0
  %460 = vmatprep.mubr.bf16.mxu0 0
  %461 = vmatmul.mubr.bf16.gmra.mrb[0].mxu0 %v300
  %v462 = vpop.f32.mrb[0].mxu0
  %v463 = vadd.f32 %v322, %v462
  %v464 = vpop.f32.mrb[0].mxu0
  %v465 = vpop.f32.mrb[0].mxu0
  %v466 = vadd.f32 %v322, %v465
  %v467 = vpop.f32.mrb[0].mxu0
  %468 = vdwg.mxu0
  %vm469 = vcmp.ge.f32.partialorder %v407, 0.0
  %vm470 = vcmp.ge.f32.partialorder %v410, 0.0
  %vm471 = vcmp.ge.f32.partialorder %v415, 0.0
  %vm472 = vcmp.ge.f32.partialorder %v418, 0.0
  %vm473 = vcmp.ge.f32.partialorder %v423, 0.0
  %vm474 = vcmp.ge.f32.partialorder %v426, 0.0
  %vm475 = vcmp.ge.f32.partialorder %v431, 0.0
  %vm476 = vcmp.ge.f32.partialorder %v434, 0.0
  %vm477 = vcmp.ge.f32.partialorder %v439, 0.0
  %vm478 = vcmp.ge.f32.partialorder %v442, 0.0
  %vm479 = vcmp.ge.f32.partialorder %v447, 0.0
  %vm480 = vcmp.ge.f32.partialorder %v450, 0.0
  %vm481 = vcmp.ge.f32.partialorder %v455, 0.0
  %vm482 = vcmp.ge.f32.partialorder %v458, 0.0
  %vm483 = vcmp.ge.f32.partialorder %v463, 0.0
  %vm484 = vcmp.ge.f32.partialorder %v466, 0.0
  %v485 = vmul.f32 %v407, 0.2
  %v486 = vmul.f32 %v410, 0.2
  %v487 = vmul.f32 %v415, 0.2
  %v488 = vmul.f32 %v418, 0.2
  %v489 = vmul.f32 %v423, 0.2
  %v490 = vmul.f32 %v426, 0.2
  %v491 = vmul.f32 %v431, 0.2
  %v492 = vmul.f32 %v434, 0.2
  %v493 = vmul.f32 %v439, 0.2
  %v494 = vmul.f32 %v442, 0.2
  %v495 = vmul.f32 %v447, 0.2
  %v496 = vmul.f32 %v450, 0.2
  %v497 = vmul.f32 %v455, 0.2
  %v498 = vmul.f32 %v458, 0.2
  %v499 = vmul.f32 %v463, 0.2
  %v500 = vmul.f32 %v466, 0.2
  %v501 = vsel %vm469, %v407, %v485
  %v502 = vsel %vm470, %v410, %v486
  %v503 = vsel %vm471, %v415, %v487
  %v504 = vsel %vm472, %v418, %v488
  %v505 = vsel %vm473, %v423, %v489
  %v506 = vsel %vm474, %v426, %v490
  %v507 = vsel %vm475, %v431, %v491
  %v508 = vsel %vm476, %v434, %v492
  %v509 = vsel %vm477, %v439, %v493
  %v510 = vsel %vm478, %v442, %v494
  %v511 = vsel %vm479, %v447, %v495
  %v512 = vsel %vm480, %v450, %v496
  %v513 = vsel %vm481, %v455, %v497
  %v514 = vsel %vm482, %v458, %v498
  %v515 = vsel %vm483, %v463, %v499
  %v516 = vsel %vm484, %v466, %v500
  %v517 = vpack.c.bf16 %v502, %v501
  %v518 = vpack.c.bf16 %v504, %v503
  %v519 = vpack.c.bf16 %v506, %v505
  %v520 = vpack.c.bf16 %v508, %v507
  %v521 = vpack.c.bf16 %v510, %v509
  %v522 = vpack.c.bf16 %v512, %v511
  %v523 = vpack.c.bf16 %v514, %v513
  %v524 = vpack.c.bf16 %v516, %v515
  %v525 = vld [vmem:[%s5] sm:$0xf]
  %v526 = vld [vmem:[%s5 + $0x4] sm:$0xf]
  %v527 = vld [vmem:[%s5 + $0x8] sm:$0xf]
  %v528 = vld [vmem:[%s5 + $0xc] sm:$0xf]
  %v529 = vld [vmem:[%s5 + $0x10] sm:$0xf]
  %v530 = vld [vmem:[%s5 + $0x14] sm:$0xf]
  %v531 = vld [vmem:[%s5 + $0x18] sm:$0xf]
  %v532 = vld [vmem:[%s5 + $0x1c] sm:$0xf]
  %v533 = vld [vmem:[%s5 + $0x20] sm:$0xf]
  %v534 = vld [vmem:[%s5 + $0x24] sm:$0xf]
  %v535 = vld [vmem:[%s5 + $0x28] sm:$0xf]
  %v536 = vld [vmem:[%s5 + $0x2c] sm:$0xf]
  %v537 = vld [vmem:[%s5 + $0x30] sm:$0xf]
  %v538 = vld [vmem:[%s5 + $0x34] sm:$0xf]
  %v539 = vld [vmem:[%s5 + $0x38] sm:$0xf]
  %v540 = vld [vmem:[%s5 + $0x3c] sm:$0xf]
  %v541 = vld [vmem:[%s6] sm:$0x1]
  %v543 = vlaneseq
  %v544 = vshrl.u32 %v543, 7
  %v545 = vsub.s32 0, %v544
  %v546 = vrot.slane %v541, %v545
  %v564 = vunpack.c.l.b16 %v525
  %v565 = vunpack.c.l.b16 %v526
  %v566 = vunpack.c.l.b16 %v527
  %v567 = vunpack.c.l.b16 %v528
  %v568 = vunpack.c.l.b16 %v529
  %v569 = vunpack.c.l.b16 %v530
  %v570 = vunpack.c.l.b16 %v531
  %v571 = vunpack.c.l.b16 %v532
  %v572 = vunpack.c.l.b16 %v533
  %v573 = vunpack.c.l.b16 %v534
  %v574 = vunpack.c.l.b16 %v535
  %v575 = vunpack.c.l.b16 %v536
  %v576 = vunpack.c.l.b16 %v537
  %v577 = vunpack.c.l.b16 %v538
  %v578 = vunpack.c.l.b16 %v539
  %v579 = vunpack.c.l.b16 %v540
  %v580 = vpack.c.b16 %v565, %v564
  %v581 = vpack.c.b16 %v567, %v566
  %v582 = vpack.c.b16 %v569, %v568
  %v583 = vpack.c.b16 %v571, %v570
  %v584 = vpack.c.b16 %v573, %v572
  %v585 = vpack.c.b16 %v575, %v574
  %v586 = vpack.c.b16 %v577, %v576
  %v587 = vpack.c.b16 %v579, %v578
  %596 = vmatprep.subr.bf16.mxu0 0
  %597 = vmatpush1.bf16.msra.mxu0 %v580
  %598 = vmatprep.subr.bf16.mxu0 0
  %599 = vmatpush1.bf16.msra.mxu0 %v581
  %600 = vmatprep.subr.bf16.mxu0 0
  %601 = vmatpush1.bf16.msra.mxu0 %v582
  %602 = vmatprep.subr.bf16.mxu0 0
  %603 = vmatpush1.bf16.msra.mxu0 %v583
  %604 = vmatprep.subr.bf16.mxu0 0
  %605 = vmatpush1.bf16.msra.mxu0 %v584
  %606 = vmatprep.subr.bf16.mxu0 0
  %607 = vmatpush1.bf16.msra.mxu0 %v585
  %608 = vmatprep.subr.bf16.mxu0 0
  %609 = vmatpush1.bf16.msra.mxu0 %v586
  %610 = vmatprep.subr.bf16.mxu0 0
  %611 = vmatpush1.bf16.msra.mxu0 %v587
  %612 = vmatprep.subr.bf16.mxu0 0
  %613 = vmatpush1.bf16.msra.mxu0 0
  %614 = vmatprep.subr.bf16.mxu0 0
  %615 = vmatpush1.bf16.msra.mxu0 0
  %616 = vmatprep.subr.bf16.mxu0 0
  %617 = vmatpush1.bf16.msra.mxu0 0
  %618 = vmatprep.subr.bf16.mxu0 0
  %619 = vmatpush1.bf16.msra.mxu0 0
  %620 = vmatprep.subr.bf16.mxu0 0
  %621 = vmatpush1.bf16.msra.mxu0 0
  %622 = vmatprep.subr.bf16.mxu0 0
  %623 = vmatpush1.bf16.msra.mxu0 0
  %624 = vmatprep.subr.bf16.mxu0 0
  %625 = vmatpush1.bf16.msra.mxu0 0
  %626 = vmatprep.subr.bf16.mxu0 0
  %627 = vmatpush1.bf16.msra.mxu0 0
  %628 = vmatprep.mubr.bf16.mxu0 0
  %629 = vmatmul.mubr.bf16.gmra.mrb[0].mxu0 %v517
  %v630 = vpop.f32.mrb[0].mxu0
  %v631 = vadd.f32 %v546, %v630
  %v632 = vpop.f32.mrb[0].mxu0
  %v633 = vpop.f32.mrb[0].mxu0
  %v634 = vadd.f32 %v546, %v633
  %v635 = vpop.f32.mrb[0].mxu0
  %636 = vmatprep.mubr.bf16.mxu0 0
  %637 = vmatmul.mubr.bf16.gmra.mrb[0].mxu0 %v518
  %v638 = vpop.f32.mrb[0].mxu0
  %v639 = vadd.f32 %v546, %v638
  %v640 = vpop.f32.mrb[0].mxu0
  %v641 = vpop.f32.mrb[0].mxu0
  %v642 = vadd.f32 %v546, %v641
  %v643 = vpop.f32.mrb[0].mxu0
  %644 = vmatprep.mubr.bf16.mxu0 0
  %645 = vmatmul.mubr.bf16.gmra.mrb[0].mxu0 %v519
  %v646 = vpop.f32.mrb[0].mxu0
  %v647 = vadd.f32 %v546, %v646
  %v648 = vpop.f32.mrb[0].mxu0
  %v649 = vpop.f32.mrb[0].mxu0
  %v650 = vadd.f32 %v546, %v649
  %v651 = vpop.f32.mrb[0].mxu0
  %652 = vmatprep.mubr.bf16.mxu0 0
  %653 = vmatmul.mubr.bf16.gmra.mrb[0].mxu0 %v520
  %v654 = vpop.f32.mrb[0].mxu0
  %v655 = vadd.f32 %v546, %v654
  %v656 = vpop.f32.mrb[0].mxu0
  %v657 = vpop.f32.mrb[0].mxu0
  %v658 = vadd.f32 %v546, %v657
  %v659 = vpop.f32.mrb[0].mxu0
  %660 = vmatprep.mubr.bf16.mxu0 0
  %661 = vmatmul.mubr.bf16.gmra.mrb[0].mxu0 %v521
  %v662 = vpop.f32.mrb[0].mxu0
  %v663 = vadd.f32 %v546, %v662
  %v664 = vpop.f32.mrb[0].mxu0
  %v665 = vpop.f32.mrb[0].mxu0
  %v666 = vadd.f32 %v546, %v665
  %v667 = vpop.f32.mrb[0].mxu0
  %668 = vmatprep.mubr.bf16.mxu0 0
  %669 = vmatmul.mubr.bf16.gmra.mrb[0].mxu0 %v522
  %v670 = vpop.f32.mrb[0].mxu0
  %v671 = vadd.f32 %v546, %v670
  %v672 = vpop.f32.mrb[0].mxu0
  %v673 = vpop.f32.mrb[0].mxu0
  %v674 = vadd.f32 %v546, %v673
  %v675 = vpop.f32.mrb[0].mxu0
  %676 = vmatprep.mubr.bf16.mxu0 0
  %677 = vmatmul.mubr.bf16.gmra.mrb[0].mxu0 %v523
  %v678 = vpop.f32.mrb[0].mxu0
  %v679 = vadd.f32 %v546, %v678
  %v680 = vpop.f32.mrb[0].mxu0
  %v681 = vpop.f32.mrb[0].mxu0
  %v682 = vadd.f32 %v546, %v681
  %v683 = vpop.f32.mrb[0].mxu0
  %684 = vmatprep.mubr.bf16.mxu0 0
  %685 = vmatmul.mubr.bf16.gmra.mrb[0].mxu0 %v524
  %v686 = vpop.f32.mrb[0].mxu0
  %v687 = vadd.f32 %v546, %v686
  %v688 = vpop.f32.mrb[0].mxu0
  %v689 = vpop.f32.mrb[0].mxu0
  %v690 = vadd.f32 %v546, %v689
  %v691 = vpop.f32.mrb[0].mxu0
  %692 = vdwg.mxu0
  %vm693 = vcmask 15360
  %694 = vst.msk [vmem:[%s7] sm:$0xff] %vm693, %v631
  %695 = vst.msk [vmem:[%s7 + $0x8] sm:$0xff] %vm693, %v634
  %696 = vst.msk [vmem:[%s7 + $0x10] sm:$0xff] %vm693, %v639
  %697 = vst.msk [vmem:[%s7 + $0x18] sm:$0xff] %vm693, %v642
  %698 = vst.msk [vmem:[%s7 + $0x20] sm:$0xff] %vm693, %v647
  %699 = vst.msk [vmem:[%s7 + $0x28] sm:$0xff] %vm693, %v650
  %700 = vst.msk [vmem:[%s7 + $0x30] sm:$0xff] %vm693, %v655
  %701 = vst.msk [vmem:[%s7 + $0x38] sm:$0xff] %vm693, %v658
  %702 = vst.msk [vmem:[%s7 + $0x40] sm:$0xff] %vm693, %v663
  %703 = vst.msk [vmem:[%s7 + $0x48] sm:$0xff] %vm693, %v666
  %704 = vst.msk [vmem:[%s7 + $0x50] sm:$0xff] %vm693, %v671
  %705 = vst.msk [vmem:[%s7 + $0x58] sm:$0xff] %vm693, %v674
  %706 = vst.msk [vmem:[%s7 + $0x60] sm:$0xff] %vm693, %v679
  %707 = vst.msk [vmem:[%s7 + $0x68] sm:$0xff] %vm693, %v682
  %708 = vst.msk [vmem:[%s7 + $0x70] sm:$0xff] %vm693, %v687
  %709 = vst.msk [vmem:[%s7 + $0x78] sm:$0xff] %vm693, %v690
  // Predicated region
  $region30: #{tpu_custom_call.1} parent=0 // pred_check
    _
  $region31: #{tpu_custom_call.1} parent=0 // pred_check_branch
    %711 = sbr.rel (0) target = $region33
  $region32: #{tpu_custom_call.1} parent=0 // pred_region
    _
  $region33: #{tpu_custom_call.1} parent=0 // pred_fallthru
    _
  // Predicated region
  $region34: #{tpu_custom_call.1} parent=0 // pred_check
    _
  $region35: #{tpu_custom_call.1} parent=0 // pred_check_branch
    %713 = sbr.rel (0) target = $region37
  $region36: #{tpu_custom_call.1} parent=0 // pred_region
    _
  $region37: #{tpu_custom_call.1} parent=0 // pred_fallthru
    _

</llo_original>
